<compile_context>
chip_gen: v6e
topology: v6e:2x2x1
jax: 0.10.0
libtpu: 0.0.40
codegen_flags: <defaults>
</compile_context>

<pallas_src>
import functools

import jax
import jax.numpy as jnp
from jax import lax
from jax.experimental import pallas as pl
from jax.experimental.pallas import tpu as pltpu
import numpy as np


_MASK_BIAS = -1.0e30    # additive bias for padded positions (finite, no NaN)
_NEG_INIT = -3.0e37     # init of the running max (finite, avoids inf-inf)


def _round_up(x, m):
    return (x + m - 1) // m * m


def _bidir_attn_kernel(v1_ref, v2_ref, m1_ref, m2r_ref,
                       o1_ref, o2_ref,
                       mrun_ref, lcol_ref):
    i = pl.program_id(1)
    n_i = pl.num_programs(1)

    # ---- init online column-softmax state at the first L1 tile of each batch
    @pl.when(i == 0)
    def _init():
        mrun_ref[...] = jnp.full(mrun_ref.shape, _NEG_INIT, dtype=mrun_ref.dtype)
        lcol_ref[...] = jnp.zeros(lcol_ref.shape, dtype=lcol_ref.dtype)
        o2_ref[...] = jnp.zeros(o2_ref.shape, dtype=o2_ref.dtype)   # accumulate in-place

    v1 = v1_ref[0]                    # (TL1, Dp)  bf16
    v2 = v2_ref[0]                    # (L2p, Dp)  bf16
    m1 = m1_ref[0]                    # (TL1, 1)   f32, 1.0 == padding
    m2r = m2r_ref[0]                  # (1, L2p)   f32, 1.0 == padding

    # similarity tile on the MXU: bf16 operands, f32 accumulation
    sim = lax.dot_general(v1, v2, (((1,), (1,)), ((), ())),
                          preferred_element_type=jnp.float32)       # (TL1, L2p)
    sim_b = sim + m1 * _MASK_BIAS + m2r * _MASK_BIAS

    # ---- single shared exp pass (row-stabilized) ------------------------
    row_max = jnp.max(sim_b, axis=1, keepdims=True)                 # (TL1, 1)
    e12 = jnp.exp(sim_b - row_max)                                  # (TL1, L2p), <= 1

    # ---- v1 -> v2 : row softmax, normalization deferred past the matmul --
    row_sum = jnp.sum(e12, axis=1, keepdims=True)                   # (TL1, 1), >= 1
    att1 = lax.dot_general(e12.astype(v2.dtype), v2, (((1,), (0,)), ((), ())),
                           preferred_element_type=jnp.float32)      # (TL1, Dp)
    inv_keep1 = pl.reciprocal(row_sum, approx=True) * (1.0 - m1)    # (TL1, 1)
    o1_ref[0] = (att1 * inv_keep1).astype(o1_ref.dtype)

    # ---- v2 -> v1 : online column softmax with a scalar running max ------
    m_old = mrun_ref[...]                                           # (1, 1)
    m_new = jnp.maximum(m_old, jnp.max(row_max, axis=0, keepdims=True))
    scale = jnp.exp(m_old - m_new)                                  # (1, 1), <= 1
    f_r = jnp.exp(row_max - m_new)                                  # (TL1, 1), <= 1
    pe = e12 * f_r                                                  # = exp(sim_b - m_new)
    lcol_ref[...] = scale * lcol_ref[...] + jnp.sum(pe, axis=0, keepdims=True)
    # transpose only the bf16 operand for the MXU (half the XLU bytes of f32)
    pe_t = jnp.transpose(pe.astype(v1.dtype))                       # (L2p, TL1) bf16
    contrib = lax.dot_general(pe_t, v1, (((1,), (0,)), ((), ())),
                              preferred_element_type=jnp.float32)   # (L2p, Dp)
    o2_ref[0] = scale * o2_ref[0] + contrib                         # f32 in-place acc
    mrun_ref[...] = m_new

    # ---- finalize attended_v2 after the last L1 tile ----------------------
    @pl.when(i == n_i - 1)
    def _fin():
        # + m2r protects padded columns (their lcol is 0); (1 - m2r) zeroes them.
        inv2 = pl.reciprocal(lcol_ref[...] + m2r, approx=True) * (1.0 - m2r)
        o2_ref[0] = o2_ref[0] * jnp.transpose(inv2)                 # (L2p, 1) bcast


def _vmem_estimate(tl1, l2p, dp, in_bytes, o1_bytes):
    """Per-step VMEM footprint, counting every live (TL1, L2p) temporary."""
    return int(
        2 * tl1 * dp * in_bytes           # v1 tile (double-buffered, bf16)
        + 2 * l2p * dp * in_bytes         # v2 (double-buffered, bf16)
        + 2 * tl1 * dp * o1_bytes         # attended_v1 tile (double-buffered)
        + 2 * l2p * dp * 4                # attended_v2 f32 accumulator block
        + tl1 * l2p * (3 * 4 + 3 * in_bytes)   # sim/e12/pe f32 + bf16 copies
        + 2 * tl1 * 128 * 4               # v1 mask (lane-padded)
        + 2 * 8 * l2p * 4                 # v2 mask (sublane-padded)
        + l2p * 4 + 4096                  # lcol / running-max scratch
    )


@functools.partial(jax.jit, static_argnames=("tile_l1", "matmul_dtype"))
def bidirectional_attention(v1, v2, v1_mask, v2_mask, *, tile_l1=512,
                            matmul_dtype=jnp.bfloat16):
    """Pallas implementation of BidirectionalAttention.forward."""
    B, L1, D = v1.shape
    _, L2, _ = v2.shape
    out_dtype = v1.dtype

    # Lane-dense padding (glue): D, L2 -> multiples of 128, L1 -> multiple of TL1.
    Dp = _round_up(D, 128)
    L2p = _round_up(L2, 128)

    in_bytes = jnp.dtype(matmul_dtype).itemsize
    o1_bytes = jnp.dtype(out_dtype).itemsize

    # Generation-aware tile selection + scoped-VMEM limit.
    try:
        vmem_cap = int(pltpu.get_tpu_info().vmem_capacity_bytes)
    except Exception:
        vmem_cap = 64 * 1024 * 1024       # conservative (v7x-sized) fallback

    TL1 = max(16, _round_up(min(int(tile_l1), _round_up(L1, 16)), 16))
    while TL1 > 64 and _vmem_estimate(TL1, L2p, Dp, in_bytes, o1_bytes) > 0.75 * vmem_cap:
        new_tl1 = max(64, _round_up(TL1 // 2, 16))
        if new_tl1 == TL1:
            break
        TL1 = new_tl1
    L1p = _round_up(L1, TL1)
    n_i = L1p // TL1

    est = _vmem_estimate(TL1, L2p, Dp, in_bytes, o1_bytes)
    # floor 32 MiB (v5e's default scoped limit is only 16), cap at 0.9*physical.
    vmem_limit = int(min(max(est * 1.35, 32 * 1024 * 1024), 0.9 * vmem_cap))

    v1p = jnp.pad(v1.astype(matmul_dtype), ((0, 0), (0, L1p - L1), (0, Dp - D)))
    v2p = jnp.pad(v2.astype(matmul_dtype), ((0, 0), (0, L2p - L2), (0, Dp - D)))
    # Padded sequence positions are flagged as padding so they never contribute.
    m1 = jnp.pad(v1_mask.astype(jnp.float32), ((0, 0), (0, L1p - L1)),
                 constant_values=1.0)
    m2 = jnp.pad(v2_mask.astype(jnp.float32), ((0, 0), (0, L2p - L2)),
                 constant_values=1.0)
    m1c = m1.reshape(B, L1p, 1)       # row-pad flag, per L1 tile
    m2r = m2.reshape(B, 1, L2p)       # col-pad flag, lane-dense row layout

    grid_spec = pltpu.PrefetchScalarGridSpec(
        num_scalar_prefetch=0,
        grid=(B, n_i),
        in_specs=[
            pl.BlockSpec((1, TL1, Dp), lambda b, i: (b, i, 0)),    # v1 tile
            pl.BlockSpec((1, L2p, Dp), lambda b, i: (b, 0, 0)),    # v2 (resident per batch)
            pl.BlockSpec((1, TL1, 1), lambda b, i: (b, i, 0)),     # v1 mask tile
            pl.BlockSpec((1, 1, L2p), lambda b, i: (b, 0, 0)),     # v2 mask (row layout)
        ],
        out_specs=[
            pl.BlockSpec((1, TL1, Dp), lambda b, i: (b, i, 0)),    # attended_v1 tile
            pl.BlockSpec((1, L2p, Dp), lambda b, i: (b, 0, 0)),    # attended_v2 f32 acc
        ],
        scratch_shapes=[
            pltpu.VMEM((1, 1), jnp.float32),      # scalar running max
            pltpu.VMEM((1, L2p), jnp.float32),    # running column sums (lane-dense)
        ],
    )

    out_shape = (
        jax.ShapeDtypeStruct((B, L1p, Dp), out_dtype),
        jax.ShapeDtypeStruct((B, L2p, Dp), jnp.float32),   # accumulated in f32
    )

    att1, att2 = pl.pallas_call(
        _bidir_attn_kernel,
        grid_spec=grid_spec,
        out_shape=out_shape,
        compiler_params=pltpu.CompilerParams(
            dimension_semantics=("parallel", "arbitrary"),
            vmem_limit_bytes=vmem_limit),
    )(v1p, v2p, m1c, m2r)

    return att1[:, :L1, :D], att2[:, :L2, :D].astype(out_dtype)


def _reference(v1, v2, v1_mask, v2_mask):
    """Pure-JAX (f32) reference matching the PyTorch forward."""
    sim = jnp.einsum("bld,bmd->blm", v1, v2)
    a12 = jax.nn.softmax(jnp.where(v2_mask[:, None, :], -jnp.inf, sim), axis=2)
    a21 = jax.nn.softmax(jnp.where(v1_mask[:, :, None], -jnp.inf, sim), axis=1)
    att1 = jnp.einsum("blm,bmd->bld", a12, v2)
    att2 = jnp.einsum("blm,bld->bmd", a21, v1)   # a21.transpose(1,2) @ v1
    att1 = jnp.where(v1_mask[:, :, None], 0.0, att1)
    att2 = jnp.where(v2_mask[:, :, None], 0.0, att2)
    return att1, att2


if __name__ == "__main__":
    B, L1, L2, D = 2, 48, 24, 32

    key = jax.random.PRNGKey(0)
    k1, k2 = jax.random.split(key)
    v1 = 0.5 * jax.random.normal(k1, (B, L1, D), dtype=jnp.float32)
    v2 = 0.5 * jax.random.normal(k2, (B, L2, D), dtype=jnp.float32)

    # True == padding position; every batch keeps some valid positions.
    v1_lens = jnp.array([L1, L1 - 11])
    v2_lens = jnp.array([L2 - 7, L2])
    v1_mask = jnp.arange(L1)[None, :] >= v1_lens[:, None]   # (B, L1) bool
    v2_mask = jnp.arange(L2)[None, :] >= v2_lens[:, None]   # (B, L2) bool

    ref1, ref2 = _reference(v1, v2, v1_mask, v2_mask)

    # tile_l1=16 -> 3 L1 tiles per batch: exercises the online column softmax.
    a1, a2 = bidirectional_attention(v1, v2, v1_mask, v2_mask, tile_l1=16)
    a1 = jax.block_until_ready(a1)
    a2 = jax.block_until_ready(a2)
    # bf16 MXU operands (f32 accumulation) + approx reciprocal -> bf16 tolerances.
    np.testing.assert_allclose(np.asarray(a1), np.asarray(ref1), rtol=3e-2, atol=3e-2)
    np.testing.assert_allclose(np.asarray(a2), np.asarray(ref2), rtol=3e-2, atol=3e-2)

    # Default tile (single L1 tile): exercises the init+finalize-on-one-step path.
    b1, b2 = bidirectional_attention(v1, v2, v1_mask, v2_mask)
    b1 = jax.block_until_ready(b1)
    b2 = jax.block_until_ready(b2)
    np.testing.assert_allclose(np.asarray(b1), np.asarray(ref1), rtol=3e-2, atol=3e-2)
    np.testing.assert_allclose(np.asarray(b2), np.asarray(ref2), rtol=3e-2, atol=3e-2)

    print("KERNEL_OK")
</pallas_src>

<mosaic_0001>
module attributes {stable_mosaic.version = 11 : i64} {
  func.func @_bidir_attn_kernel(%arg0: i32, %arg1: i32, %arg2: memref<1x16x128xbf16, #tpu.memory_space<vmem>>, %arg3: memref<1x128x128xbf16, #tpu.memory_space<vmem>>, %arg4: memref<1x16x1xf32, #tpu.memory_space<vmem>>, %arg5: memref<1x1x128xf32, #tpu.memory_space<vmem>>, %arg6: memref<1x16x128xf32, #tpu.memory_space<vmem>>, %arg7: memref<1x128x128xf32, #tpu.memory_space<vmem>>, %arg8: memref<1x1xf32, #tpu.memory_space<vmem>>, %arg9: memref<1x128xf32, #tpu.memory_space<vmem>>) attributes {dimension_semantics = [#tpu.dimension_semantics<parallel>, #tpu.dimension_semantics<arbitrary>], iteration_bounds = array<i64: 2, 3>, scalar_prefetch = 0 : i64, scratch_operands = 2 : i64, tpu.core_type = #tpu.core_type<tc>, window_params = [{transform_indices = @transform_0, window_bounds = array<i64: 1, 16, 128>}, {transform_indices = @transform_1, window_bounds = array<i64: 1, 128, 128>}, {transform_indices = @transform_2, window_bounds = array<i64: 1, 16, 1>}, {transform_indices = @transform_3, window_bounds = array<i64: 1, 1, 128>}, {transform_indices = @transform_4, window_bounds = array<i64: 1, 16, 128>}, {transform_indices = @transform_5, window_bounds = array<i64: 1, 128, 128>}]} {
    %c0_i32 = arith.constant 0 : i32
    %0 = arith.cmpi eq, %arg1, %c0_i32 : i32
    %1 = arith.extui %0 : i1 to i32
    %c0_i32_0 = arith.constant 0 : i32
    %2 = arith.cmpi ne, %1, %c0_i32_0 : i32
    scf.if %2 {
      %cst_39 = arith.constant -3.000000e+37 : f32
      %71 = vector.broadcast %cst_39 : f32 to vector<1x1xf32>
      %c0_40 = arith.constant 0 : index
      %c0_41 = arith.constant 0 : index
      %72 = vector.load %arg8[%c0_40, %c0_41] : memref<1x1xf32, #tpu.memory_space<vmem>>, vector<1x1xf32>
      tpu.vector_store %arg8[%c0_40, %c0_41], %71 {strides = array<i32>} : memref<1x1xf32, #tpu.memory_space<vmem>>, vector<1x1xf32>,
      %cst_42 = arith.constant 0.000000e+00 : f32
      %73 = vector.broadcast %cst_42 : f32 to vector<1x128xf32>
      %c0_43 = arith.constant 0 : index
      %c0_44 = arith.constant 0 : index
      %74 = vector.load %arg9[%c0_43, %c0_44] : memref<1x128xf32, #tpu.memory_space<vmem>>, vector<1x128xf32>
      tpu.vector_store %arg9[%c0_43, %c0_44], %73 {strides = array<i32>} : memref<1x128xf32, #tpu.memory_space<vmem>>, vector<1x128xf32>,
      %cst_45 = arith.constant 0.000000e+00 : f32
      %75 = vector.broadcast %cst_45 : f32 to vector<1x128x128xf32>
      %c0_46 = arith.constant 0 : index
      %c0_47 = arith.constant 0 : index
      %c0_48 = arith.constant 0 : index
      %76 = vector.load %arg7[%c0_46, %c0_47, %c0_48] : memref<1x128x128xf32, #tpu.memory_space<vmem>>, vector<1x128x128xf32>
      tpu.vector_store %arg7[%c0_46, %c0_47, %c0_48], %75 {strides = array<i32>} : memref<1x128x128xf32, #tpu.memory_space<vmem>>, vector<1x128x128xf32>,
    } else {
    }
    %c0 = arith.constant 0 : index
    %c0_1 = arith.constant 0 : index
    %c0_2 = arith.constant 0 : index
    %3 = vector.load %arg2[%c0, %c0_1, %c0_2] : memref<1x16x128xbf16, #tpu.memory_space<vmem>>, vector<1x16x128xbf16>
    %4 = vector.shape_cast %3 : vector<1x16x128xbf16> to vector<16x128xbf16>
    %c0_3 = arith.constant 0 : index
    %c0_4 = arith.constant 0 : index
    %c0_5 = arith.constant 0 : index
    %5 = vector.load %arg3[%c0_3, %c0_4, %c0_5] : memref<1x128x128xbf16, #tpu.memory_space<vmem>>, vector<1x128x128xbf16>
    %6 = vector.shape_cast %5 : vector<1x128x128xbf16> to vector<128x128xbf16>
    %c0_6 = arith.constant 0 : index
    %c0_7 = arith.constant 0 : index
    %c0_8 = arith.constant 0 : index
    %7 = vector.load %arg4[%c0_6, %c0_7, %c0_8] : memref<1x16x1xf32, #tpu.memory_space<vmem>>, vector<1x16x1xf32>
    %8 = vector.shape_cast %7 : vector<1x16x1xf32> to vector<16x1xf32>
    %c0_9 = arith.constant 0 : index
    %c0_10 = arith.constant 0 : index
    %c0_11 = arith.constant 0 : index
    %9 = vector.load %arg5[%c0_9, %c0_10, %c0_11] : memref<1x1x128xf32, #tpu.memory_space<vmem>>, vector<1x1x128xf32>
    %10 = vector.shape_cast %9 : vector<1x1x128xf32> to vector<1x128xf32>
    %cst = arith.constant dense<0.000000e+00> : vector<16x128xf32>
    %11 = tpu.matmul %4, %6, %cst {dimension_numbers = #tpu.dot_dimension_numbers<[1], [1], [0], [0], [0, 0, 1, 0], [], []>} : vector<16x128xbf16>, vector<128x128xbf16>, vector<16x128xf32> -> vector<16x128xf32>
    %cst_12 = arith.constant -1.000000e+30 : f32
    %12 = vector.broadcast %cst_12 : f32 to vector<16x1xf32>
    %13 = arith.mulf %8, %12 : vector<16x1xf32>
    %14 = vector.broadcast %13 : vector<16x1xf32> to vector<16x128xf32>
    %15 = arith.addf %11, %14 : vector<16x128xf32>
    %cst_13 = arith.constant -1.000000e+30 : f32
    %16 = vector.broadcast %cst_13 : f32 to vector<1x128xf32>
    %17 = arith.mulf %10, %16 : vector<1x128xf32>
    %18 = vector.broadcast %17 : vector<1x128xf32> to vector<16x128xf32>
    %19 = arith.addf %15, %18 : vector<16x128xf32>
    %cst_14 = arith.constant dense<0xFF800000> : vector<16xf32>
    %20 = vector.multi_reduction <maximumf>, %19, %cst_14 [1] : vector<16x128xf32> to vector<16xf32>
    %21 = vector.shape_cast %20 : vector<16xf32> to vector<16x1xf32>
    %22 = vector.broadcast %21 : vector<16x1xf32> to vector<16x128xf32>
    %23 = arith.subf %19, %22 : vector<16x128xf32>
    %24 = math.exp %23 : vector<16x128xf32>
    %cst_15 = arith.constant dense<0.000000e+00> : vector<16xf32>
    %25 = vector.multi_reduction <add>, %24, %cst_15 [1] : vector<16x128xf32> to vector<16xf32>
    %26 = vector.shape_cast %25 : vector<16xf32> to vector<16x1xf32>
    %27 = arith.truncf %24 : vector<16x128xf32> to vector<16x128xbf16>
    %cst_16 = arith.constant dense<0.000000e+00> : vector<16x128xf32>
    %28 = tpu.matmul %27, %6, %cst_16 {dimension_numbers = #tpu.dot_dimension_numbers<[1], [0], [0], [1], [0, 0, 1, 1], [], []>} : vector<16x128xbf16>, vector<128x128xbf16>, vector<16x128xf32> -> vector<16x128xf32>
    %29 = tpu.reciprocal %26 {approx = true} : vector<16x1xf32> -> vector<16x1xf32>
    %cst_17 = arith.constant 1.000000e+00 : f32
    %30 = vector.broadcast %cst_17 : f32 to vector<16x1xf32>
    %31 = arith.subf %30, %8 : vector<16x1xf32>
    %32 = arith.mulf %29, %31 : vector<16x1xf32>
    %33 = vector.broadcast %32 : vector<16x1xf32> to vector<16x128xf32>
    %34 = arith.mulf %28, %33 : vector<16x128xf32>
    %c0_18 = arith.constant 0 : index
    %c0_19 = arith.constant 0 : index
    %c0_20 = arith.constant 0 : index
    %35 = vector.load %arg6[%c0_18, %c0_19, %c0_20] : memref<1x16x128xf32, #tpu.memory_space<vmem>>, vector<1x16x128xf32>
    %36 = vector.shape_cast %35 : vector<1x16x128xf32> to vector<16x128xf32>
    %37 = vector.shape_cast %34 : vector<16x128xf32> to vector<1x16x128xf32>
    tpu.vector_store %arg6[%c0_18, %c0_19, %c0_20], %37 {strides = array<i32>} : memref<1x16x128xf32, #tpu.memory_space<vmem>>, vector<1x16x128xf32>,
    %c0_21 = arith.constant 0 : index
    %c0_22 = arith.constant 0 : index
    %38 = vector.load %arg8[%c0_21, %c0_22] : memref<1x1xf32, #tpu.memory_space<vmem>>, vector<1x1xf32>
    %cst_23 = arith.constant dense<0xFF800000> : vector<1xf32>
    %39 = vector.multi_reduction <maximumf>, %21, %cst_23 [0] : vector<16x1xf32> to vector<1xf32>
    %40 = vector.shape_cast %39 : vector<1xf32> to vector<1x1xf32>
    %41 = arith.maximumf %38, %40 : vector<1x1xf32>
    %42 = arith.subf %38, %41 : vector<1x1xf32>
    %43 = math.exp %42 : vector<1x1xf32>
    %44 = vector.broadcast %41 : vector<1x1xf32> to vector<16x1xf32>
    %45 = arith.subf %21, %44 : vector<16x1xf32>
    %46 = math.exp %45 : vector<16x1xf32>
    %47 = vector.broadcast %46 : vector<16x1xf32> to vector<16x128xf32>
    %48 = arith.mulf %24, %47 : vector<16x128xf32>
    %c0_24 = arith.constant 0 : index
    %c0_25 = arith.constant 0 : index
    %49 = vector.load %arg9[%c0_24, %c0_25] : memref<1x128xf32, #tpu.memory_space<vmem>>, vector<1x128xf32>
    %50 = vector.broadcast %43 : vector<1x1xf32> to vector<1x128xf32>
    %51 = arith.mulf %50, %49 : vector<1x128xf32>
    %cst_26 = arith.constant dense<0.000000e+00> : vector<128xf32>
    %52 = vector.multi_reduction <add>, %48, %cst_26 [0] : vector<16x128xf32> to vector<128xf32>
    %53 = vector.shape_cast %52 : vector<128xf32> to vector<1x128xf32>
    %54 = arith.addf %51, %53 : vector<1x128xf32>
    %c0_27 = arith.constant 0 : index
    %c0_28 = arith.constant 0 : index
    %55 = vector.load %arg9[%c0_27, %c0_28] : memref<1x128xf32, #tpu.memory_space<vmem>>, vector<1x128xf32>
    tpu.vector_store %arg9[%c0_27, %c0_28], %54 {strides = array<i32>} : memref<1x128xf32, #tpu.memory_space<vmem>>, vector<1x128xf32>,
    %56 = arith.truncf %48 : vector<16x128xf32> to vector<16x128xbf16>
    %57 = tpu.transpose %56, [1, 0] : vector<16x128xbf16> -> vector<128x16xbf16>
    %cst_29 = arith.constant dense<0.000000e+00> : vector<128x128xf32>
    %58 = tpu.matmul %57, %4, %cst_29 {dimension_numbers = #tpu.dot_dimension_numbers<[1], [0], [0], [1], [0, 0, 1, 1], [], []>} : vector<128x16xbf16>, vector<16x128xbf16>, vector<128x128xf32> -> vector<128x128xf32>
    %c0_30 = arith.constant 0 : index
    %c0_31 = arith.constant 0 : index
    %c0_32 = arith.constant 0 : index
    %59 = vector.load %arg7[%c0_30, %c0_31, %c0_32] : memref<1x128x128xf32, #tpu.memory_space<vmem>>, vector<1x128x128xf32>
    %60 = vector.shape_cast %59 : vector<1x128x128xf32> to vector<128x128xf32>
    %61 = vector.broadcast %43 : vector<1x1xf32> to vector<128x128xf32>
    %62 = arith.mulf %61, %60 : vector<128x128xf32>
    %63 = arith.addf %62, %58 : vector<128x128xf32>
    %c0_33 = arith.constant 0 : index
    %c0_34 = arith.constant 0 : index
    %c0_35 = arith.constant 0 : index
    %64 = vector.load %arg7[%c0_33, %c0_34, %c0_35] : memref<1x128x128xf32, #tpu.memory_space<vmem>>, vector<1x128x128xf32>
    %65 = vector.shape_cast %64 : vector<1x128x128xf32> to vector<128x128xf32>
    %66 = vector.shape_cast %63 : vector<128x128xf32> to vector<1x128x128xf32>
    tpu.vector_store %arg7[%c0_33, %c0_34, %c0_35], %66 {strides = array<i32>} : memref<1x128x128xf32, #tpu.memory_space<vmem>>, vector<1x128x128xf32>,
    %c0_36 = arith.constant 0 : index
    %c0_37 = arith.constant 0 : index
    %67 = vector.load %arg8[%c0_36, %c0_37] : memref<1x1xf32, #tpu.memory_space<vmem>>, vector<1x1xf32>
    tpu.vector_store %arg8[%c0_36, %c0_37], %41 {strides = array<i32>} : memref<1x1xf32, #tpu.memory_space<vmem>>, vector<1x1xf32>,
    %c2_i32 = arith.constant 2 : i32
    %68 = arith.cmpi eq, %arg1, %c2_i32 : i32
    %69 = arith.extui %68 : i1 to i32
    %c0_i32_38 = arith.constant 0 : i32
    %70 = arith.cmpi ne, %69, %c0_i32_38 : i32
    scf.if %70 {
      %c0_39 = arith.constant 0 : index
      %c0_40 = arith.constant 0 : index
      %71 = vector.load %arg9[%c0_39, %c0_40] : memref<1x128xf32, #tpu.memory_space<vmem>>, vector<1x128xf32>
      %72 = arith.addf %71, %10 : vector<1x128xf32>
      %73 = tpu.reciprocal %72 {approx = true} : vector<1x128xf32> -> vector<1x128xf32>
      %cst_41 = arith.constant 1.000000e+00 : f32
      %74 = vector.broadcast %cst_41 : f32 to vector<1x128xf32>
      %75 = arith.subf %74, %10 : vector<1x128xf32>
      %76 = arith.mulf %73, %75 : vector<1x128xf32>
      %c0_42 = arith.constant 0 : index
      %c0_43 = arith.constant 0 : index
      %c0_44 = arith.constant 0 : index
      %77 = vector.load %arg7[%c0_42, %c0_43, %c0_44] : memref<1x128x128xf32, #tpu.memory_space<vmem>>, vector<1x128x128xf32>
      %78 = vector.shape_cast %77 : vector<1x128x128xf32> to vector<128x128xf32>
      %79 = tpu.transpose %76, [1, 0] : vector<1x128xf32> -> vector<128x1xf32>
      %80 = vector.broadcast %79 : vector<128x1xf32> to vector<128x128xf32>
      %81 = arith.mulf %78, %80 : vector<128x128xf32>
      %c0_45 = arith.constant 0 : index
      %c0_46 = arith.constant 0 : index
      %c0_47 = arith.constant 0 : index
      %82 = vector.load %arg7[%c0_45, %c0_46, %c0_47] : memref<1x128x128xf32, #tpu.memory_space<vmem>>, vector<1x128x128xf32>
      %83 = vector.shape_cast %82 : vector<1x128x128xf32> to vector<128x128xf32>
      %84 = vector.shape_cast %81 : vector<128x128xf32> to vector<1x128x128xf32>
      tpu.vector_store %arg7[%c0_45, %c0_46, %c0_47], %84 {strides = array<i32>} : memref<1x128x128xf32, #tpu.memory_space<vmem>>, vector<1x128x128xf32>,
    } else {
    }
    return
  }
  func.func @transform_0(%arg0: i32, %arg1: i32) -> (i32, i32, i32) {
    %c0_i32 = arith.constant 0 : i32
    %c0_i32_0 = arith.constant 0 : i32
    return %arg0, %arg1, %c0_i32 : i32, i32, i32
  }
  func.func @transform_1(%arg0: i32, %arg1: i32) -> (i32, i32, i32) {
    %c0_i32 = arith.constant 0 : i32
    %c0_i32_0 = arith.constant 0 : i32
    %c0_i32_1 = arith.constant 0 : i32
    return %arg0, %c0_i32, %c0_i32_0 : i32, i32, i32
  }
  func.func @transform_2(%arg0: i32, %arg1: i32) -> (i32, i32, i32) {
    %c0_i32 = arith.constant 0 : i32
    %c0_i32_0 = arith.constant 0 : i32
    return %arg0, %arg1, %c0_i32 : i32, i32, i32
  }
  func.func @transform_3(%arg0: i32, %arg1: i32) -> (i32, i32, i32) {
    %c0_i32 = arith.constant 0 : i32
    %c0_i32_0 = arith.constant 0 : i32
    %c0_i32_1 = arith.constant 0 : i32
    return %arg0, %c0_i32, %c0_i32_0 : i32, i32, i32
  }
  func.func @transform_4(%arg0: i32, %arg1: i32) -> (i32, i32, i32) {
    %c0_i32 = arith.constant 0 : i32
    %c0_i32_0 = arith.constant 0 : i32
    return %arg0, %arg1, %c0_i32 : i32, i32, i32
  }
  func.func @transform_5(%arg0: i32, %arg1: i32) -> (i32, i32, i32) {
    %c0_i32 = arith.constant 0 : i32
    %c0_i32_0 = arith.constant 0 : i32
    %c0_i32_1 = arith.constant 0 : i32
    return %arg0, %c0_i32, %c0_i32_0 : i32, i32, i32
  }
}

</mosaic_0001>

<llo_original>
// kernel: bidirectional_attention.1
$region0: #{bidirectional_attention.1}
  #allocation0 [shape = 'u32[]', space=smem, size = 0x4, offset = 0x4, fixed_abs, tag = 'smem constant byte address 0x4 - core index']
  #allocation1 [shape = 'u32[144,128]{1,0:T(1,128)}', space=vmem, size = 0x12000, scoped, tag = 'internal scratch']
  #allocation2 [shape = 'f32[1,1]{1,0:T(1,128)}', space=vmem, size = 0x200, scoped, tag = 'scratch operand']
  #allocation3 [shape = 'f32[1,128]{1,0:T(1,128)}', space=vmem, size = 0x200, scoped, tag = 'scratch operand']
  %s0 = inlined_call_operand.vmem [shape: bf16[2,48,128], index: 0, kind: input, shape index: {}]
  %s1 = inlined_call_operand.vmem [shape: bf16[2,128,128], index: 1, kind: input, shape index: {}]
  %s2 = inlined_call_operand.vmem [shape: f32[2,48,1], index: 2, kind: input, shape index: {}]
  %s3 = inlined_call_operand.vmem [shape: f32[2,1,128], index: 3, kind: input, shape index: {}]
  %s4 = inlined_call_operand.vmem [shape: f32[2,48,128], index: 4, kind: output, shape index: {0}]
  %s5 = inlined_call_operand.vmem [shape: f32[2,128,128], index: 5, kind: output, shape index: {1}]
  %6 = xla_tuple %s4, %s5
  %s7 = sld [smem:[#allocation0]]
  $region65: #{bidirectional_attention.1} parent=0
    _
  %s9 = ssub.s32 1, %s7
  %s10 = scalar_select 0, %s9, %s7
  loop: start=0, step=1, limit=8
  $region2: #{bidirectional_attention.1} parent=0 // loop_pre_header
    _
  $region3: #{bidirectional_attention.1} parent=0 // loop_header
    %s12 = sphi 0, %s16
    %p13 = scmp.ge.s32.totalorder %s12, 8
    %s19 = sphi 0, %s31
    %s20 = sphi 0, %s27
    %s21 = sphi 0, %s19
    %s22 = sphi 0, %s20
    %s23 = sphi 0, %s21
    %s24 = sphi 0, %s22
    %s36 = sphi 0, %s38
    %s39 = sphi 0, %s36
    %s40 = sphi 0, %s39
    %s56 = sphi 0, %s40
    %s62 = sphi 0, %s64
    %s65 = sphi 0, %s62
    %s66 = sphi 0, %s65
    %s82 = sphi 0, %s66
    %s90 = sphi 0, %s92
    %s93 = sphi 0, %s90
    %s94 = sphi 0, %s93
    %s110 = sphi 0, %s94
    %s116 = sphi 0, %s118
    %s119 = sphi 0, %s116
    %s120 = sphi 0, %s119
    %s136 = sphi 0, %s120
    %s144 = sphi 0, %s146
    %s147 = sphi 0, %s144
    %s148 = sphi 0, %s147
    %s164 = sphi 0, %s148
    %s170 = sphi 0, %s172
    %s173 = sphi 0, %s170
    %s174 = sphi 0, %s173
    %s190 = sphi 0, %s174
  $region4: #{bidirectional_attention.1} parent=0 // loop_header_branch
    %15 = sbr.rel (%p13) target = $region8
  $region5: #{bidirectional_attention.1} parent=0 // loop_body
    %s17 = ssub.s32 %s12, 1
    %s18 = ssub.s32 %s12, 2
    %s25 = sadd.s32 1, %s20
    %p26 = scmp.ge.s32.totalorder %s25, 3
    %s27 = scalar_select %p26, 0, %s25
    %s28 = sadd.s32 1, %s19
    %s29 = scalar_select %p26, %s28, %s19
    %p30 = scmp.ge.s32.totalorder %s29, 2
    %s31 = scalar_select %p30, 0, %s29
    %s32 = ssub.s32 %s19, %s31
    %s33 = ssub.s32 %s20, %s27
    %s34 = sor.u32 %s32, %s33
    %p35 = scmp.eq.s32.totalorder %s34, 0
    %s37 = sadd.s32 %s36, 1
    %s38 = scalar_select %p35, %s36, %s37
    %p41 = pneg %p35
    %p42 = scmp.eq.s32.totalorder %s12, 5
    %p43 = por %p41, %p42
    %p44 = scmp.ne.s32.totalorder %s36, %s39
    %p45 = scmp.eq.s32.totalorder %s12, 0
    %p46 = por %p44, %p45
    %p47 = scmp.ne.s32.totalorder %s36, %s39
    %p48 = scmp.eq.s32.totalorder %s17, 5
    %p49 = por %p47, %p48
    %p50 = scmp.ne.s32.totalorder %s39, %s40
    %p51 = scmp.eq.s32.totalorder %s17, 0
    %p52 = por %p50, %p51
    %p53 = scmp.ne.s32.totalorder %s39, %s40
    %p54 = scmp.eq.s32.totalorder %s18, 5
    %p55 = por %p53, %p54
    %p57 = scmp.ne.s32.totalorder %s40, %s56
    %p58 = scmp.eq.s32.totalorder %s18, 0
    %p59 = por %p57, %p58
    %s60 = ssub.s32 %s19, %s31
    %p61 = scmp.eq.s32.totalorder %s60, 0
    %s63 = sadd.s32 %s62, 1
    %s64 = scalar_select %p61, %s62, %s63
    %p67 = pneg %p61
    %p68 = scmp.eq.s32.totalorder %s12, 5
    %p69 = por %p67, %p68
    %p70 = scmp.ne.s32.totalorder %s62, %s65
    %p71 = scmp.eq.s32.totalorder %s12, 0
    %p72 = por %p70, %p71
    %p73 = scmp.ne.s32.totalorder %s62, %s65
    %p74 = scmp.eq.s32.totalorder %s17, 5
    %p75 = por %p73, %p74
    %p76 = scmp.ne.s32.totalorder %s65, %s66
    %p77 = scmp.eq.s32.totalorder %s17, 0
    %p78 = por %p76, %p77
    %p79 = scmp.ne.s32.totalorder %s65, %s66
    %p80 = scmp.eq.s32.totalorder %s18, 5
    %p81 = por %p79, %p80
    %p83 = scmp.ne.s32.totalorder %s66, %s82
    %p84 = scmp.eq.s32.totalorder %s18, 0
    %p85 = por %p83, %p84
    %s86 = ssub.s32 %s19, %s31
    %s87 = ssub.s32 %s20, %s27
    %s88 = sor.u32 %s86, %s87
    %p89 = scmp.eq.s32.totalorder %s88, 0
    %s91 = sadd.s32 %s90, 1
    %s92 = scalar_select %p89, %s90, %s91
    %p95 = pneg %p89
    %p96 = scmp.eq.s32.totalorder %s12, 5
    %p97 = por %p95, %p96
    %p98 = scmp.ne.s32.totalorder %s90, %s93
    %p99 = scmp.eq.s32.totalorder %s12, 0
    %p100 = por %p98, %p99
    %p101 = scmp.ne.s32.totalorder %s90, %s93
    %p102 = scmp.eq.s32.totalorder %s17, 5
    %p103 = por %p101, %p102
    %p104 = scmp.ne.s32.totalorder %s93, %s94
    %p105 = scmp.eq.s32.totalorder %s17, 0
    %p106 = por %p104, %p105
    %p107 = scmp.ne.s32.totalorder %s93, %s94
    %p108 = scmp.eq.s32.totalorder %s18, 5
    %p109 = por %p107, %p108
    %p111 = scmp.ne.s32.totalorder %s94, %s110
    %p112 = scmp.eq.s32.totalorder %s18, 0
    %p113 = por %p111, %p112
    %s114 = ssub.s32 %s19, %s31
    %p115 = scmp.eq.s32.totalorder %s114, 0
    %s117 = sadd.s32 %s116, 1
    %s118 = scalar_select %p115, %s116, %s117
    %p121 = pneg %p115
    %p122 = scmp.eq.s32.totalorder %s12, 5
    %p123 = por %p121, %p122
    %p124 = scmp.ne.s32.totalorder %s116, %s119
    %p125 = scmp.eq.s32.totalorder %s12, 0
    %p126 = por %p124, %p125
    %p127 = scmp.ne.s32.totalorder %s116, %s119
    %p128 = scmp.eq.s32.totalorder %s17, 5
    %p129 = por %p127, %p128
    %p130 = scmp.ne.s32.totalorder %s119, %s120
    %p131 = scmp.eq.s32.totalorder %s17, 0
    %p132 = por %p130, %p131
    %p133 = scmp.ne.s32.totalorder %s119, %s120
    %p134 = scmp.eq.s32.totalorder %s18, 5
    %p135 = por %p133, %p134
    %p137 = scmp.ne.s32.totalorder %s120, %s136
    %p138 = scmp.eq.s32.totalorder %s18, 0
    %p139 = por %p137, %p138
    %s140 = ssub.s32 %s19, %s31
    %s141 = ssub.s32 %s20, %s27
    %s142 = sor.u32 %s140, %s141
    %p143 = scmp.eq.s32.totalorder %s142, 0
    %s145 = sadd.s32 %s144, 1
    %s146 = scalar_select %p143, %s144, %s145
    %p149 = pneg %p143
    %p150 = scmp.eq.s32.totalorder %s12, 5
    %p151 = por %p149, %p150
    %p152 = scmp.ne.s32.totalorder %s144, %s147
    %p153 = scmp.eq.s32.totalorder %s12, 0
    %p154 = por %p152, %p153
    %p155 = scmp.ne.s32.totalorder %s144, %s147
    %p156 = scmp.eq.s32.totalorder %s17, 5
    %p157 = por %p155, %p156
    %p158 = scmp.ne.s32.totalorder %s147, %s148
    %p159 = scmp.eq.s32.totalorder %s17, 0
    %p160 = por %p158, %p159
    %p161 = scmp.ne.s32.totalorder %s147, %s148
    %p162 = scmp.eq.s32.totalorder %s18, 5
    %p163 = por %p161, %p162
    %p165 = scmp.ne.s32.totalorder %s148, %s164
    %p166 = scmp.eq.s32.totalorder %s18, 0
    %p167 = por %p165, %p166
    %s168 = ssub.s32 %s19, %s31
    %p169 = scmp.eq.s32.totalorder %s168, 0
    %s171 = sadd.s32 %s170, 1
    %s172 = scalar_select %p169, %s170, %s171
    %p175 = pneg %p169
    %p176 = scmp.eq.s32.totalorder %s12, 5
    %p177 = por %p175, %p176
    %p178 = scmp.ne.s32.totalorder %s170, %s173
    %p179 = scmp.eq.s32.totalorder %s12, 0
    %p180 = por %p178, %p179
    %p181 = scmp.ne.s32.totalorder %s170, %s173
    %p182 = scmp.eq.s32.totalorder %s17, 5
    %p183 = por %p181, %p182
    %p184 = scmp.ne.s32.totalorder %s173, %s174
    %p185 = scmp.eq.s32.totalorder %s17, 0
    %p186 = por %p184, %p185
    %p187 = scmp.ne.s32.totalorder %s173, %s174
    %p188 = scmp.eq.s32.totalorder %s18, 5
    %p189 = por %p187, %p188
    %p191 = scmp.ne.s32.totalorder %s174, %s190
    %p192 = scmp.eq.s32.totalorder %s18, 0
    %p193 = por %p191, %p192
    %p194 = scmp.le.s32.totalorder 1, %s12
    %p195 = scmp.lt.s32.totalorder %s12, 7
    %p196 = pnand %p194, %p195
    %p197 = pneg %p196
    // Predicated region
    $region9: #{bidirectional_attention.1} parent=5 // pred_check
      _
    $region10: #{bidirectional_attention.1} parent=5 // pred_check_branch
      %199 = sbr.rel (%p196) target = $region12
    $region11: #{bidirectional_attention.1} parent=5 // pred_region
      %s200 = ssub.s32 %s12, 1
    $region12: #{bidirectional_attention.1} parent=5 // pred_fallthru
      _
    %p201 = scmp.lt.s32.totalorder %s12, 6
    // Predicated region
    $region13: #{bidirectional_attention.1} parent=5 // pred_check
      %p202 = pneg %p201
    $region14: #{bidirectional_attention.1} parent=5 // pred_check_branch
      %204 = sbr.rel (%p202) target = $region16
    $region15: #{bidirectional_attention.1} parent=5 // pred_region
      // Predicated region
      $region17: #{bidirectional_attention.1} parent=15 // pred_check
        %p205 = pneg %p46
      $region18: #{bidirectional_attention.1} parent=15 // pred_check_branch
        %207 = sbr.rel (%p205) target = $region20
      $region19: #{bidirectional_attention.1} parent=15 // pred_region
        %s208 = smul.u32 2, %s20
        %p209 = scmp.lt.s32.totalorder %s19, 1
        %s210 = scalar_select %p209, %s19, 1
        %p211 = scmp.lt.s32.totalorder %s208, 5
        %s212 = scalar_select %p211, %s208, 5
        %s213 = smul.addr %s210, 6
        %s214 = sadd.s32 %s212, %s213
        %s215 = smul.addr %s214, 4
        %s216 = scalar_lea.vmem %s0, %s215
        %s217 = smul.u32 2, %s20
      $region20: #{bidirectional_attention.1} parent=15 // pred_fallthru
        _
      // Predicated region
      $region21: #{bidirectional_attention.1} parent=15 // pred_check
        %p218 = pneg %p72
      $region22: #{bidirectional_attention.1} parent=15 // pred_check_branch
        %220 = sbr.rel (%p218) target = $region24
      $region23: #{bidirectional_attention.1} parent=15 // pred_region
        %p221 = scmp.lt.s32.totalorder %s19, 1
        %s222 = scalar_select %p221, %s19, 1
        %s223 = smul.addr %s222, 16
        %s224 = smul.addr %s223, 4
        %s225 = scalar_lea.vmem %s1, %s224
      $region24: #{bidirectional_attention.1} parent=15 // pred_fallthru
        _
      // Predicated region
      $region25: #{bidirectional_attention.1} parent=15 // pred_check
        %p226 = pneg %p100
      $region26: #{bidirectional_attention.1} parent=15 // pred_check_branch
        %228 = sbr.rel (%p226) target = $region28
      $region27: #{bidirectional_attention.1} parent=15 // pred_region
        %s229 = smul.u32 2, %s20
        %p230 = scmp.lt.s32.totalorder %s19, 1
        %s231 = scalar_select %p230, %s19, 1
        %p232 = scmp.lt.s32.totalorder %s229, 5
        %s233 = scalar_select %p232, %s229, 5
        %s234 = smul.addr %s231, 6
        %s235 = sadd.s32 %s233, %s234
        %s236 = smul.addr %s235, 8
        %s237 = scalar_lea.vmem %s2, %s236
        %s238 = smul.u32 2, %s20
      $region28: #{bidirectional_attention.1} parent=15 // pred_fallthru
        _
      // Predicated region
      $region29: #{bidirectional_attention.1} parent=15 // pred_check
        %p239 = pneg %p126
      $region30: #{bidirectional_attention.1} parent=15 // pred_check_branch
        %241 = sbr.rel (%p239) target = $region32
      $region31: #{bidirectional_attention.1} parent=15 // pred_region
        %p242 = scmp.lt.s32.totalorder %s19, 1
        %s243 = scalar_select %p242, %s19, 1
        %s244 = scalar_lea.vmem %s3, %s243
      $region32: #{bidirectional_attention.1} parent=15 // pred_fallthru
        _
    $region16: #{bidirectional_attention.1} parent=5 // pred_fallthru
      _
    %p245 = scmp.le.s32.totalorder 1, %s12
    %p246 = scmp.lt.s32.totalorder %s12, 7
    %p247 = pnand %p245, %p246
    %p248 = pneg %p247
    // Predicated region
    $region33: #{bidirectional_attention.1} parent=5 // pred_check
      _
    $region34: #{bidirectional_attention.1} parent=5 // pred_check_branch
      %250 = sbr.rel (%p247) target = $region36
    $region35: #{bidirectional_attention.1} parent=5 // pred_region
      %s251 = ssub.s32 %s12, 1
      %s252 = smul.u32 2, %s22
      %p253 = scmp.lt.s32.totalorder %s21, 1
      %s254 = scalar_select %p253, %s21, 1
      %p255 = scmp.lt.s32.totalorder %s252, 5
      %s256 = scalar_select %p255, %s252, 5
      %s257 = smul.addr %s254, 6
      %s258 = sadd.s32 %s256, %s257
      %s259 = smul.addr %s258, 4
      %s260 = scalar_lea.vmem %s0, %s259
      %p261 = pneg %p52
      %p262 = pneg %p49
      %p263 = scmp.lt.s32.totalorder %s21, 1
      %s264 = scalar_select %p263, %s21, 1
      %s265 = smul.addr %s264, 16
      %s266 = smul.addr %s265, 4
      %s267 = scalar_lea.vmem %s1, %s266
      %p268 = pneg %p78
      %p269 = pneg %p75
      %s270 = smul.u32 2, %s22
      %p271 = scmp.lt.s32.totalorder %s21, 1
      %s272 = scalar_select %p271, %s21, 1
      %p273 = scmp.lt.s32.totalorder %s270, 5
      %s274 = scalar_select %p273, %s270, 5
      %s275 = smul.addr %s272, 6
      %s276 = sadd.s32 %s274, %s275
      %s277 = smul.addr %s276, 8
      %s278 = scalar_lea.vmem %s2, %s277
      %p279 = pneg %p106
      %p280 = pneg %p103
      %p281 = scmp.lt.s32.totalorder %s21, 1
      %s282 = scalar_select %p281, %s21, 1
      %s283 = scalar_lea.vmem %s3, %s282
      %p284 = pneg %p132
      %p285 = pneg %p129
      %p286 = pneg %p160
      %p287 = pneg %p157
      %s288 = smul.u32 2, %s22
      %p289 = scmp.lt.s32.totalorder %s21, 1
      %s290 = scalar_select %p289, %s21, 1
      %p291 = scmp.lt.s32.totalorder %s288, 5
      %s292 = scalar_select %p291, %s288, 5
      %s293 = smul.addr %s290, 6
      %s294 = sadd.s32 %s292, %s293
      %s295 = smul.addr %s294, 8
      %s296 = scalar_lea.vmem %s4, %s295
      %p297 = pneg %p186
      %p298 = pneg %p183
      %p299 = scmp.lt.s32.totalorder %s21, 1
      %s300 = scalar_select %p299, %s21, 1
      %s301 = smul.addr %s300, 16
      %s302 = smul.addr %s301, 8
      %s303 = scalar_lea.vmem %s5, %s302
      %s304 = smul.u32 2, %s22
      %p305 = scmp.lt.s32.totalorder %s21, 1
      %s306 = scalar_select %p305, %s21, 1
      %p307 = scmp.lt.s32.totalorder %s304, 5
      %s308 = scalar_select %p307, %s304, 5
      %s309 = smul.addr %s306, 6
      %s310 = sadd.s32 %s308, %s309
      %s311 = smul.addr %s310, 4
      %s312 = scalar_lea.vmem %s0, %s311
      %s313 = smul.u32 2, %s22
      %p314 = scmp.lt.s32.totalorder %s21, 1
      %s315 = scalar_select %p314, %s21, 1
      %s316 = smul.addr %s315, 16
      %s317 = smul.addr %s316, 4
      %s318 = scalar_lea.vmem %s1, %s317
      %s319 = smul.u32 2, %s22
      %p320 = scmp.lt.s32.totalorder %s21, 1
      %s321 = scalar_select %p320, %s21, 1
      %p322 = scmp.lt.s32.totalorder %s319, 5
      %s323 = scalar_select %p322, %s319, 5
      %s324 = smul.addr %s321, 6
      %s325 = sadd.s32 %s323, %s324
      %s326 = smul.addr %s325, 8
      %s327 = scalar_lea.vmem %s2, %s326
      %s328 = smul.u32 2, %s22
      %p329 = scmp.lt.s32.totalorder %s21, 1
      %s330 = scalar_select %p329, %s21, 1
      %s331 = scalar_lea.vmem %s3, %s330
      %s332 = smul.u32 2, %s22
      %p333 = scmp.lt.s32.totalorder %s21, 1
      %s334 = scalar_select %p333, %s21, 1
      %p335 = scmp.lt.s32.totalorder %s332, 5
      %s336 = scalar_select %p335, %s332, 5
      %s337 = smul.addr %s334, 6
      %s338 = sadd.s32 %s336, %s337
      %s339 = smul.addr %s338, 8
      %s340 = scalar_lea.vmem %s4, %s339
      %s341 = smul.u32 2, %s22
      %p342 = scmp.lt.s32.totalorder %s21, 1
      %s343 = scalar_select %p342, %s21, 1
      %s344 = smul.addr %s343, 16
      %s345 = smul.addr %s344, 8
      %s346 = scalar_lea.vmem %s5, %s345
      %p348 = scmp.eq.s32.totalorder %s22, 0
      // Predicated region
      $region37: #{bidirectional_attention.1} parent=35 // pred_check
        %p349 = pneg %p348
      $region38: #{bidirectional_attention.1} parent=35 // pred_check_branch
        %351 = sbr.rel (%p349) target = $region40
      $region39: #{bidirectional_attention.1} parent=35 // pred_region
        %vm352 = vcmask 0
        %353 = vst.msk [vmem:[#allocation2] sm:$0x1] %vm352, -3e+37
        %354 = vst [vmem:[#allocation3] sm:$0x1] 0.0
        %355 = vst [vmem:[%s346] sm:$0xff] 0.0
        %356 = vst [vmem:[%s346 + $0x8] sm:$0xff] 0.0
        %357 = vst [vmem:[%s346 + $0x10] sm:$0xff] 0.0
        %358 = vst [vmem:[%s346 + $0x18] sm:$0xff] 0.0
        %359 = vst [vmem:[%s346 + $0x20] sm:$0xff] 0.0
        %360 = vst [vmem:[%s346 + $0x28] sm:$0xff] 0.0
        %361 = vst [vmem:[%s346 + $0x30] sm:$0xff] 0.0
        %362 = vst [vmem:[%s346 + $0x38] sm:$0xff] 0.0
        %363 = vst [vmem:[%s346 + $0x40] sm:$0xff] 0.0
        %364 = vst [vmem:[%s346 + $0x48] sm:$0xff] 0.0
        %365 = vst [vmem:[%s346 + $0x50] sm:$0xff] 0.0
        %366 = vst [vmem:[%s346 + $0x58] sm:$0xff] 0.0
        %367 = vst [vmem:[%s346 + $0x60] sm:$0xff] 0.0
        %368 = vst [vmem:[%s346 + $0x68] sm:$0xff] 0.0
        %369 = vst [vmem:[%s346 + $0x70] sm:$0xff] 0.0
        %370 = vst [vmem:[%s346 + $0x78] sm:$0xff] 0.0
      $region40: #{bidirectional_attention.1} parent=35 // pred_fallthru
        _
      %v371 = vld [vmem:[%s312] sm:$0xf]
      %v372 = vld [vmem:[%s312 + $0x4] sm:$0xf]
      %v373 = vld [vmem:[%s318] sm:$0xf]
      %v374 = vld [vmem:[%s318 + $0x4] sm:$0xf]
      %v375 = vld [vmem:[%s318 + $0x8] sm:$0xf]
      %v376 = vld [vmem:[%s318 + $0xc] sm:$0xf]
      %v377 = vld [vmem:[%s318 + $0x10] sm:$0xf]
      %v378 = vld [vmem:[%s318 + $0x14] sm:$0xf]
      %v379 = vld [vmem:[%s318 + $0x18] sm:$0xf]
      %v380 = vld [vmem:[%s318 + $0x1c] sm:$0xf]
      %v381 = vld [vmem:[%s318 + $0x20] sm:$0xf]
      %v382 = vld [vmem:[%s318 + $0x24] sm:$0xf]
      %v383 = vld [vmem:[%s318 + $0x28] sm:$0xf]
      %v384 = vld [vmem:[%s318 + $0x2c] sm:$0xf]
      %v385 = vld [vmem:[%s318 + $0x30] sm:$0xf]
      %v386 = vld [vmem:[%s318 + $0x34] sm:$0xf]
      %v387 = vld [vmem:[%s318 + $0x38] sm:$0xf]
      %v388 = vld [vmem:[%s318 + $0x3c] sm:$0xf]
      %v389 = vld [vmem:[%s327] sm:$0xff]
      %v390 = vld [vmem:[%s327 + $0x8] sm:$0xff]
      %v391 = vld [vmem:[%s331] sm:$0x1]
      %v392 = vmul.f32 %v389, -1e+30
      %v393 = vmul.f32 %v390, -1e+30
      %395 = vset.pattern.permute.xlu0 0
      %396 = vperm.xlu0 %395, %v392
      %v397 = vpop.permute.xlu0 %396
      %400 = vset.pattern.permute.xlu0 0
      %401 = vperm.xlu0 %400, %v393
      %v402 = vpop.permute.xlu0 %401
      %v406 = vunpack.c.l.b16 %v371
      %v407 = vunpack.c.l.b16 %v372
      %v408 = vpack.c.b16 %v407, %v406
      %v426 = vunpack.c.l.b16 %v373
      %v427 = vunpack.c.l.b16 %v374
      %v428 = vunpack.c.l.b16 %v375
      %v429 = vunpack.c.l.b16 %v376
      %v430 = vunpack.c.l.b16 %v377
      %v431 = vunpack.c.l.b16 %v378
      %v432 = vunpack.c.l.b16 %v379
      %v433 = vunpack.c.l.b16 %v380
      %v434 = vunpack.c.l.b16 %v381
      %v435 = vunpack.c.l.b16 %v382
      %v436 = vunpack.c.l.b16 %v383
      %v437 = vunpack.c.l.b16 %v384
      %v438 = vunpack.c.l.b16 %v385
      %v439 = vunpack.c.l.b16 %v386
      %v440 = vunpack.c.l.b16 %v387
      %v441 = vunpack.c.l.b16 %v388
      %v442 = vpack.c.b16 %v427, %v426
      %v443 = vpack.c.b16 %v429, %v428
      %v444 = vpack.c.b16 %v431, %v430
      %v445 = vpack.c.b16 %v433, %v432
      %v446 = vpack.c.b16 %v435, %v434
      %v447 = vpack.c.b16 %v437, %v436
      %v448 = vpack.c.b16 %v439, %v438
      %v449 = vpack.c.b16 %v441, %v440
      %458 = vmatprep.subr.bf16.mxu0 0
      %459 = vmatpush1.bf16.xpose.msra.mxu0 %v449
      %460 = vmatprep.subr.bf16.mxu0 0
      %461 = vmatpush1.bf16.xpose.msra.mxu0 %v448
      %462 = vmatprep.subr.bf16.mxu0 0
      %463 = vmatpush1.bf16.xpose.msra.mxu0 %v447
      %464 = vmatprep.subr.bf16.mxu0 0
      %465 = vmatpush1.bf16.xpose.msra.mxu0 %v446
      %466 = vmatprep.subr.bf16.mxu0 0
      %467 = vmatpush1.bf16.xpose.msra.mxu0 %v445
      %468 = vmatprep.subr.bf16.mxu0 0
      %469 = vmatpush1.bf16.xpose.msra.mxu0 %v444
      %470 = vmatprep.subr.bf16.mxu0 0
      %471 = vmatpush1.bf16.xpose.msra.mxu0 %v443
      %472 = vmatprep.subr.bf16.mxu0 0
      %473 = vmatpush1.bf16.xpose.msra.mxu0 %v442
      %474 = vmatprep.subr.bf16.mxu0 0
      %475 = vmatpush2.bf16.xpose.msra.mxu0 0
      %476 = vmatprep.subr.bf16.mxu0 0
      %477 = vmatpush2.bf16.xpose.msra.mxu0 0
      %478 = vmatprep.subr.bf16.mxu0 0
      %479 = vmatpush2.bf16.xpose.msra.mxu0 0
      %480 = vmatprep.subr.bf16.mxu0 0
      %481 = vmatpush2.bf16.xpose.msra.mxu0 0
      %482 = vmatprep.subr.bf16.mxu0 0
      %483 = vmatpush2.bf16.xpose.msra.mxu0 0
      %484 = vmatprep.subr.bf16.mxu0 0
      %485 = vmatpush2.bf16.xpose.msra.mxu0 0
      %486 = vmatprep.subr.bf16.mxu0 0
      %487 = vmatpush2.bf16.xpose.msra.mxu0 0
      %488 = vmatprep.subr.bf16.mxu0 0
      %489 = vmatpush2.bf16.xpose.msra.mxu0 0
      %490 = vmatprep.mubr.bf16.mxu0 0
      %491 = vmatmul.mubr.bf16.gmra.mxu0 %v408
      %v492 = vpop.f32.mrf.mxu0
      %v493 = vadd.f32 %v397, %v492
      %v494 = vpop.f32.mrf.mxu0
      %v495 = vpop.f32.mrf.mxu0
      %v496 = vadd.f32 %v402, %v495
      %v497 = vpop.f32.mrf.mxu0
      %498 = vdwg.mxu0
      %v499 = vmul.f32 %v391, -1e+30
      %v501 = vlaneseq
      %v502 = vshrl.u32 %v501, 7
      %v503 = vsub.s32 0, %v502
      %v504 = vrot.slane %v499, %v503
      %v506 = vadd.f32 %v493, %v504
      %v507 = vadd.f32 %v496, %v504
      %508 = vmax.xlane.f32.xlu0 %v506
      %v509 = vpop.xlane.xlu0 %508
      %510 = vmax.xlane.f32.xlu0 %v507
      %v511 = vpop.xlane.xlu0 %510
      %v512 = vsub.f32 %v506, %v509
      %v513 = vsub.f32 %v507, %v511
      %v514 = vmul.f32 %v512, 1.442695
      %v515 = vpow.pop %v514
      %v516 = vmul.f32 %v513, 1.442695
      %v517 = vpow.pop %v516
      %518 = vadd.xlane.f32.xlu0 %v515
      %v519 = vpop.xlane.xlu0 %518
      %520 = vadd.xlane.f32.xlu0 %v517
      %v521 = vpop.xlane.xlu0 %520
      %v522 = vpack.c.bf16 %v517, %v515
      %523 = vmatprep.subr.bf16.mxu0 0
      %524 = vmatpush1.bf16.msra.mxu0 %v449
      %525 = vmatprep.subr.bf16.mxu0 0
      %526 = vmatpush1.bf16.msra.mxu0 %v448
      %527 = vmatprep.subr.bf16.mxu0 0
      %528 = vmatpush1.bf16.msra.mxu0 %v447
      %529 = vmatprep.subr.bf16.mxu0 0
      %530 = vmatpush1.bf16.msra.mxu0 %v446
      %531 = vmatprep.subr.bf16.mxu0 0
      %532 = vmatpush1.bf16.msra.mxu0 %v445
      %533 = vmatprep.subr.bf16.mxu0 0
      %534 = vmatpush1.bf16.msra.mxu0 %v444
      %535 = vmatprep.subr.bf16.mxu0 0
      %536 = vmatpush1.bf16.msra.mxu0 %v443
      %537 = vmatprep.subr.bf16.mxu0 0
      %538 = vmatpush1.bf16.msra.mxu0 %v442
      %539 = vmatprep.subr.bf16.mxu0 0
      %540 = vmatpush2.bf16.msra.mxu0 0
      %541 = vmatprep.subr.bf16.mxu0 0
      %542 = vmatpush2.bf16.msra.mxu0 0
      %543 = vmatprep.subr.bf16.mxu0 0
      %544 = vmatpush2.bf16.msra.mxu0 0
      %545 = vmatprep.subr.bf16.mxu0 0
      %546 = vmatpush2.bf16.msra.mxu0 0
      %547 = vmatprep.subr.bf16.mxu0 0
      %548 = vmatpush2.bf16.msra.mxu0 0
      %549 = vmatprep.subr.bf16.mxu0 0
      %550 = vmatpush2.bf16.msra.mxu0 0
      %551 = vmatprep.subr.bf16.mxu0 0
      %552 = vmatpush2.bf16.msra.mxu0 0
      %553 = vmatprep.subr.bf16.mxu0 0
      %554 = vmatpush2.bf16.msra.mxu0 0
      %555 = vmatprep.mubr.bf16.mxu0 0
      %556 = vmatmul.mubr.bf16.gmra.mxu0 %v522
      %v557 = vpop.f32.mrf.mxu0
      %v558 = vadd.f32 0.0, %v557
      %v559 = vpop.f32.mrf.mxu0
      %v560 = vpop.f32.mrf.mxu0
      %v561 = vadd.f32 0.0, %v560
      %v562 = vpop.f32.mrf.mxu0
      %563 = vdwg.mxu0
      %v564 = vrcp.pop %v519
      %v565 = vrcp.pop %v521
      %v566 = vsub.f32 1.0, %v389
      %v567 = vsub.f32 1.0, %v390
      %v568 = vmul.f32 %v564, %v566
      %v569 = vmul.f32 %v565, %v567
      %571 = vset.pattern.permute.xlu0 0
      %572 = vperm.xlu0 %571, %v568
      %v573 = vpop.permute.xlu0 %572
      %576 = vset.pattern.permute.xlu0 0
      %577 = vperm.xlu0 %576, %v569
      %v578 = vpop.permute.xlu0 %577
      %v580 = vmul.f32 %v558, %v573
      %v581 = vmul.f32 %v561, %v578
      %582 = vst [vmem:[%s340] sm:$0xff] %v580
      %583 = vst [vmem:[%s340 + $0x8] sm:$0xff] %v581
      %v584 = vld [vmem:[#allocation2] sm:$0x1]
      %v585 = vmax.f32 %v509, %v511
      %v586 = vrot.slane %v585, 4
      %v587 = vmax.f32 %v585, %v586
      %v588 = vrot.slane %v587, 2
      %v589 = vmax.f32 %v587, %v588
      %v590 = vrot.slane %v589, 1
      %v591 = vmax.f32 %v589, %v590
      %v592 = vmax.f32 %v584, %v591
      %v593 = vsub.f32 %v584, %v592
      %v594 = vmul.f32 %v593, 1.442695
      %v595 = vpow.pop %v594
      %v597 = vlaneseq
      %v598 = vshrl.u32 %v597, 7
      %v599 = vsub.s32 0, %v598
      %v600 = vrot.slane %v592, %v599
      %v602 = vsub.f32 %v509, %v600
      %v603 = vsub.f32 %v511, %v600
      %v604 = vmul.f32 %v602, 1.442695
      %v605 = vpow.pop %v604
      %v606 = vmul.f32 %v603, 1.442695
      %v607 = vpow.pop %v606
      %609 = vset.pattern.permute.xlu0 0
      %610 = vperm.xlu0 %609, %v605
      %v611 = vpop.permute.xlu0 %610
      %614 = vset.pattern.permute.xlu0 0
      %615 = vperm.xlu0 %614, %v607
      %v616 = vpop.permute.xlu0 %615
      %v618 = vmul.f32 %v515, %v611
      %v619 = vmul.f32 %v517, %v616
      %v620 = vld [vmem:[#allocation3] sm:$0x1]
      %622 = vset.pattern.permute.xlu0 0
      %623 = vperm.xlu0 %622, %v595
      %v624 = vpop.permute.xlu0 %623
      %v626 = vlaneseq
      %v627 = vshrl.u32 %v626, 7
      %v628 = vsub.s32 0, %v627
      %v629 = vrot.slane %v624, %v628
      %v630 = vmul.f32 %v629, %v620
      %v631 = vadd.f32 %v618, %v619
      %v632 = vrot.slane %v631, 4
      %v633 = vadd.f32 %v631, %v632
      %v634 = vrot.slane %v633, 2
      %v635 = vadd.f32 %v633, %v634
      %v636 = vrot.slane %v635, 1
      %v637 = vadd.f32 %v635, %v636
      %v638 = vadd.f32 %v630, %v637
      %639 = vst [vmem:[#allocation3] sm:$0x1] %v638
      %v640 = vpack.c.bf16 %v619, %v618
      %641 = vxpose.xlu0.c.b16.start [1/8] %v640, 128
      %642 = vxpose.xlu0.c.b16.cont [2/8] 0, 128
      %643 = vxpose.xlu0.c.b16.cont [3/8] 0, 128
      %644 = vxpose.xlu0.c.b16.cont [4/8] 0, 128
      %645 = vxpose.xlu0.c.b16.cont [5/8] 0, 128
      %646 = vxpose.xlu0.c.b16.cont [6/8] 0, 128
      %647 = vxpose.xlu0.c.b16.cont [7/8] 0, 128
      %648 = vxpose.xlu0.c.b16.end [8/8] 0, 128
      %v649 = vpop.trf.xlu0
      %v650 = vpop.trf.xlu0
      %v651 = vpop.trf.xlu0
      %v652 = vpop.trf.xlu0
      %v653 = vpop.trf.xlu0
      %v654 = vpop.trf.xlu0
      %v655 = vpop.trf.xlu0
      %v656 = vpop.trf.xlu0
      %vm657 = vcmask 130048
      %v659 = vsel %vm657, %v649, 0
      %v662 = vsel %vm657, %v650, 0
      %v665 = vsel %vm657, %v651, 0
      %v668 = vsel %vm657, %v652, 0
      %v671 = vsel %vm657, %v653, 0
      %v674 = vsel %vm657, %v654, 0
      %v677 = vsel %vm657, %v655, 0
      %v680 = vsel %vm657, %v656, 0
      %682 = vmatprep.subr.bf16.mxu0 0
      %683 = vmatpush1.bf16.msra.mxu0 0
      %684 = vmatprep.subr.bf16.mxu0 0
      %685 = vmatpush1.bf16.msra.mxu0 0
      %686 = vmatprep.subr.bf16.mxu0 0
      %687 = vmatpush1.bf16.msra.mxu0 0
      %688 = vmatprep.subr.bf16.mxu0 0
      %689 = vmatpush1.bf16.msra.mxu0 0
      %690 = vmatprep.subr.bf16.mxu0 0
      %691 = vmatpush1.bf16.msra.mxu0 0
      %692 = vmatprep.subr.bf16.mxu0 0
      %693 = vmatpush1.bf16.msra.mxu0 0
      %694 = vmatprep.subr.bf16.mxu0 0
      %695 = vmatpush1.bf16.msra.mxu0 0
      %696 = vmatprep.subr.bf16.mxu0 0
      %697 = vmatpush1.bf16.msra.mxu0 %v408
      %698 = vmatprep.subr.bf16.mxu0 0
      %699 = vmatpush2.bf16.msra.mxu0 0
      %700 = vmatprep.subr.bf16.mxu0 0
      %701 = vmatpush2.bf16.msra.mxu0 0
      %702 = vmatprep.subr.bf16.mxu0 0
      %703 = vmatpush2.bf16.msra.mxu0 0
      %704 = vmatprep.subr.bf16.mxu0 0
      %705 = vmatpush2.bf16.msra.mxu0 0
      %706 = vmatprep.subr.bf16.mxu0 0
      %707 = vmatpush2.bf16.msra.mxu0 0
      %708 = vmatprep.subr.bf16.mxu0 0
      %709 = vmatpush2.bf16.msra.mxu0 0
      %710 = vmatprep.subr.bf16.mxu0 0
      %711 = vmatpush2.bf16.msra.mxu0 0
      %712 = vmatprep.subr.bf16.mxu0 0
      %713 = vmatpush2.bf16.msra.mxu0 0
      %714 = vmatprep.mubr.bf16.mxu0 0
      %715 = vmatmul.mubr.bf16.gmra.mxu0 %v659
      %v716 = vpop.f32.mrf.mxu0
      %v717 = vadd.f32 0.0, %v716
      %v718 = vpop.f32.mrf.mxu0
      %v719 = vpop.f32.mrf.mxu0
      %v720 = vadd.f32 0.0, %v719
      %v721 = vpop.f32.mrf.mxu0
      %722 = vmatprep.mubr.bf16.mxu0 0
      %723 = vmatmul.mubr.bf16.gmra.mxu0 %v662
      %v724 = vpop.f32.mrf.mxu0
      %v725 = vadd.f32 0.0, %v724
      %v726 = vpop.f32.mrf.mxu0
      %v727 = vpop.f32.mrf.mxu0
      %v728 = vadd.f32 0.0, %v727
      %v729 = vpop.f32.mrf.mxu0
      %730 = vmatprep.mubr.bf16.mxu0 0
      %731 = vmatmul.mubr.bf16.gmra.mxu0 %v665
      %v732 = vpop.f32.mrf.mxu0
      %v733 = vadd.f32 0.0, %v732
      %v734 = vpop.f32.mrf.mxu0
      %v735 = vpop.f32.mrf.mxu0
      %v736 = vadd.f32 0.0, %v735
      %v737 = vpop.f32.mrf.mxu0
      %738 = vmatprep.mubr.bf16.mxu0 0
      %739 = vmatmul.mubr.bf16.gmra.mxu0 %v668
      %v740 = vpop.f32.mrf.mxu0
      %v741 = vadd.f32 0.0, %v740
      %v742 = vpop.f32.mrf.mxu0
      %v743 = vpop.f32.mrf.mxu0
      %v744 = vadd.f32 0.0, %v743
      %v745 = vpop.f32.mrf.mxu0
      %746 = vmatprep.mubr.bf16.mxu0 0
      %747 = vmatmul.mubr.bf16.gmra.mxu0 %v671
      %v748 = vpop.f32.mrf.mxu0
      %v749 = vadd.f32 0.0, %v748
      %v750 = vpop.f32.mrf.mxu0
      %v751 = vpop.f32.mrf.mxu0
      %v752 = vadd.f32 0.0, %v751
      %v753 = vpop.f32.mrf.mxu0
      %754 = vmatprep.mubr.bf16.mxu0 0
      %755 = vmatmul.mubr.bf16.gmra.mxu0 %v674
      %v756 = vpop.f32.mrf.mxu0
      %v757 = vadd.f32 0.0, %v756
      %v758 = vpop.f32.mrf.mxu0
      %v759 = vpop.f32.mrf.mxu0
      %v760 = vadd.f32 0.0, %v759
      %v761 = vpop.f32.mrf.mxu0
      %762 = vmatprep.mubr.bf16.mxu0 0
      %763 = vmatmul.mubr.bf16.gmra.mxu0 %v677
      %v764 = vpop.f32.mrf.mxu0
      %v765 = vadd.f32 0.0, %v764
      %v766 = vpop.f32.mrf.mxu0
      %v767 = vpop.f32.mrf.mxu0
      %v768 = vadd.f32 0.0, %v767
      %v769 = vpop.f32.mrf.mxu0
      %770 = vmatprep.mubr.bf16.mxu0 0
      %771 = vmatmul.mubr.bf16.gmra.mxu0 %v680
      %v772 = vpop.f32.mrf.mxu0
      %v773 = vadd.f32 0.0, %v772
      %v774 = vpop.f32.mrf.mxu0
      %v775 = vpop.f32.mrf.mxu0
      %v776 = vadd.f32 0.0, %v775
      %v777 = vpop.f32.mrf.mxu0
      %778 = vdwg.mxu0
      %v779 = vld [vmem:[%s346] sm:$0xff]
      %v780 = vld [vmem:[%s346 + $0x8] sm:$0xff]
      %v781 = vld [vmem:[%s346 + $0x10] sm:$0xff]
      %v782 = vld [vmem:[%s346 + $0x18] sm:$0xff]
      %v783 = vld [vmem:[%s346 + $0x20] sm:$0xff]
      %v784 = vld [vmem:[%s346 + $0x28] sm:$0xff]
      %v785 = vld [vmem:[%s346 + $0x30] sm:$0xff]
      %v786 = vld [vmem:[%s346 + $0x38] sm:$0xff]
      %v787 = vld [vmem:[%s346 + $0x40] sm:$0xff]
      %v788 = vld [vmem:[%s346 + $0x48] sm:$0xff]
      %v789 = vld [vmem:[%s346 + $0x50] sm:$0xff]
      %v790 = vld [vmem:[%s346 + $0x58] sm:$0xff]
      %v791 = vld [vmem:[%s346 + $0x60] sm:$0xff]
      %v792 = vld [vmem:[%s346 + $0x68] sm:$0xff]
      %v793 = vld [vmem:[%s346 + $0x70] sm:$0xff]
      %v794 = vld [vmem:[%s346 + $0x78] sm:$0xff]
      %v795 = vlaneseq
      %v796 = vshrl.u32 %v795, 7
      %v797 = vsub.s32 0, %v796
      %v798 = vrot.slane %v595, %v797
      %799 = vset.pattern.permute.xlu0 0
      %800 = vperm.xlu0 %799, %v798
      %v801 = vpop.permute.xlu0 %800
      %v803 = vmul.f32 %v801, %v779
      %v804 = vmul.f32 %v801, %v780
      %v805 = vmul.f32 %v801, %v781
      %v806 = vmul.f32 %v801, %v782
      %v807 = vmul.f32 %v801, %v783
      %v808 = vmul.f32 %v801, %v784
      %v809 = vmul.f32 %v801, %v785
      %v810 = vmul.f32 %v801, %v786
      %v811 = vmul.f32 %v801, %v787
      %v812 = vmul.f32 %v801, %v788
      %v813 = vmul.f32 %v801, %v789
      %v814 = vmul.f32 %v801, %v790
      %v815 = vmul.f32 %v801, %v791
      %v816 = vmul.f32 %v801, %v792
      %v817 = vmul.f32 %v801, %v793
      %v818 = vmul.f32 %v801, %v794
      %v819 = vadd.f32 %v803, %v717
      %v820 = vadd.f32 %v804, %v720
      %v821 = vadd.f32 %v805, %v725
      %v822 = vadd.f32 %v806, %v728
      %v823 = vadd.f32 %v807, %v733
      %v824 = vadd.f32 %v808, %v736
      %v825 = vadd.f32 %v809, %v741
      %v826 = vadd.f32 %v810, %v744
      %v827 = vadd.f32 %v811, %v749
      %v828 = vadd.f32 %v812, %v752
      %v829 = vadd.f32 %v813, %v757
      %v830 = vadd.f32 %v814, %v760
      %v831 = vadd.f32 %v815, %v765
      %v832 = vadd.f32 %v816, %v768
      %v833 = vadd.f32 %v817, %v773
      %v834 = vadd.f32 %v818, %v776
      %835 = vst [vmem:[%s346] sm:$0xff] %v819
      %836 = vst [vmem:[%s346 + $0x8] sm:$0xff] %v820
      %837 = vst [vmem:[%s346 + $0x10] sm:$0xff] %v821
      %838 = vst [vmem:[%s346 + $0x18] sm:$0xff] %v822
      %839 = vst [vmem:[%s346 + $0x20] sm:$0xff] %v823
      %840 = vst [vmem:[%s346 + $0x28] sm:$0xff] %v824
      %841 = vst [vmem:[%s346 + $0x30] sm:$0xff] %v825
      %842 = vst [vmem:[%s346 + $0x38] sm:$0xff] %v826
      %843 = vst [vmem:[%s346 + $0x40] sm:$0xff] %v827
      %844 = vst [vmem:[%s346 + $0x48] sm:$0xff] %v828
      %845 = vst [vmem:[%s346 + $0x50] sm:$0xff] %v829
      %846 = vst [vmem:[%s346 + $0x58] sm:$0xff] %v830
      %847 = vst [vmem:[%s346 + $0x60] sm:$0xff] %v831
      %848 = vst [vmem:[%s346 + $0x68] sm:$0xff] %v832
      %849 = vst [vmem:[%s346 + $0x70] sm:$0xff] %v833
      %850 = vst [vmem:[%s346 + $0x78] sm:$0xff] %v834
      %vm851 = vcmask 0
      %852 = vst.msk [vmem:[#allocation2] sm:$0x1] %vm851, %v592
      %p853 = scmp.eq.s32.totalorder %s22, 2
      // Predicated region
      $region41: #{bidirectional_attention.1} parent=35 // pred_check
        %p854 = pneg %p853
      $region42: #{bidirectional_attention.1} parent=35 // pred_check_branch
        %856 = sbr.rel (%p854) target = $region44
      $region43: #{bidirectional_attention.1} parent=35 // pred_region
        %v857 = vld [vmem:[#allocation3] sm:$0x1]
        %v858 = vadd.f32 %v857, %v391
        %v859 = vrcp.pop %v858
        %v860 = vsub.f32 1.0, %v391
        %v861 = vmul.f32 %v859, %v860
        %v862 = vld [vmem:[%s346] sm:$0xff]
        %v863 = vld [vmem:[%s346 + $0x8] sm:$0xff]
        %v864 = vld [vmem:[%s346 + $0x10] sm:$0xff]
        %v865 = vld [vmem:[%s346 + $0x18] sm:$0xff]
        %v866 = vld [vmem:[%s346 + $0x20] sm:$0xff]
        %v867 = vld [vmem:[%s346 + $0x28] sm:$0xff]
        %v868 = vld [vmem:[%s346 + $0x30] sm:$0xff]
        %v869 = vld [vmem:[%s346 + $0x38] sm:$0xff]
        %v870 = vld [vmem:[%s346 + $0x40] sm:$0xff]
        %v871 = vld [vmem:[%s346 + $0x48] sm:$0xff]
        %v872 = vld [vmem:[%s346 + $0x50] sm:$0xff]
        %v873 = vld [vmem:[%s346 + $0x58] sm:$0xff]
        %v874 = vld [vmem:[%s346 + $0x60] sm:$0xff]
        %v875 = vld [vmem:[%s346 + $0x68] sm:$0xff]
        %v876 = vld [vmem:[%s346 + $0x70] sm:$0xff]
        %v877 = vld [vmem:[%s346 + $0x78] sm:$0xff]
        %878 = vxpose.xlu0.b32.start [1/16] %v861, 128
        %879 = vxpose.xlu0.b32.cont [2/16] 0.0, 128
        %880 = vxpose.xlu0.b32.cont [3/16] 0.0, 128
        %881 = vxpose.xlu0.b32.cont [4/16] 0.0, 128
        %882 = vxpose.xlu0.b32.cont [5/16] 0.0, 128
        %883 = vxpose.xlu0.b32.cont [6/16] 0.0, 128
        %884 = vxpose.xlu0.b32.cont [7/16] 0.0, 128
        %885 = vxpose.xlu0.b32.cont [8/16] 0.0, 128
        %886 = vxpose.xlu0.b32.cont [9/16] 0.0, 128
        %887 = vxpose.xlu0.b32.cont [10/16] 0.0, 128
        %888 = vxpose.xlu0.b32.cont [11/16] 0.0, 128
        %889 = vxpose.xlu0.b32.cont [12/16] 0.0, 128
        %890 = vxpose.xlu0.b32.cont [13/16] 0.0, 128
        %891 = vxpose.xlu0.b32.cont [14/16] 0.0, 128
        %892 = vxpose.xlu0.b32.cont [15/16] 0.0, 128
        %893 = vxpose.xlu0.b32.end [16/16] 0.0, 128
        %v894 = vpop.trf.xlu0
        %v895 = vpop.trf.xlu0
        %v896 = vpop.trf.xlu0
        %v897 = vpop.trf.xlu0
        %v898 = vpop.trf.xlu0
        %v899 = vpop.trf.xlu0
        %v900 = vpop.trf.xlu0
        %v901 = vpop.trf.xlu0
        %v902 = vpop.trf.xlu0
        %v903 = vpop.trf.xlu0
        %v904 = vpop.trf.xlu0
        %v905 = vpop.trf.xlu0
        %v906 = vpop.trf.xlu0
        %v907 = vpop.trf.xlu0
        %v908 = vpop.trf.xlu0
        %v909 = vpop.trf.xlu0
        %911 = vset.pattern.permute.xlu0 0
        %912 = vperm.xlu0 %911, %v894
        %v913 = vpop.permute.xlu0 %912
        %916 = vset.pattern.permute.xlu0 0
        %917 = vperm.xlu0 %916, %v895
        %v918 = vpop.permute.xlu0 %917
        %921 = vset.pattern.permute.xlu0 0
        %922 = vperm.xlu0 %921, %v896
        %v923 = vpop.permute.xlu0 %922
        %926 = vset.pattern.permute.xlu0 0
        %927 = vperm.xlu0 %926, %v897
        %v928 = vpop.permute.xlu0 %927
        %931 = vset.pattern.permute.xlu0 0
        %932 = vperm.xlu0 %931, %v898
        %v933 = vpop.permute.xlu0 %932
        %936 = vset.pattern.permute.xlu0 0
        %937 = vperm.xlu0 %936, %v899
        %v938 = vpop.permute.xlu0 %937
        %941 = vset.pattern.permute.xlu0 0
        %942 = vperm.xlu0 %941, %v900
        %v943 = vpop.permute.xlu0 %942
        %946 = vset.pattern.permute.xlu0 0
        %947 = vperm.xlu0 %946, %v901
        %v948 = vpop.permute.xlu0 %947
        %951 = vset.pattern.permute.xlu0 0
        %952 = vperm.xlu0 %951, %v902
        %v953 = vpop.permute.xlu0 %952
        %956 = vset.pattern.permute.xlu0 0
        %957 = vperm.xlu0 %956, %v903
        %v958 = vpop.permute.xlu0 %957
        %961 = vset.pattern.permute.xlu0 0
        %962 = vperm.xlu0 %961, %v904
        %v963 = vpop.permute.xlu0 %962
        %966 = vset.pattern.permute.xlu0 0
        %967 = vperm.xlu0 %966, %v905
        %v968 = vpop.permute.xlu0 %967
        %971 = vset.pattern.permute.xlu0 0
        %972 = vperm.xlu0 %971, %v906
        %v973 = vpop.permute.xlu0 %972
        %976 = vset.pattern.permute.xlu0 0
        %977 = vperm.xlu0 %976, %v907
        %v978 = vpop.permute.xlu0 %977
        %981 = vset.pattern.permute.xlu0 0
        %982 = vperm.xlu0 %981, %v908
        %v983 = vpop.permute.xlu0 %982
        %986 = vset.pattern.permute.xlu0 0
        %987 = vperm.xlu0 %986, %v909
        %v988 = vpop.permute.xlu0 %987
        %v990 = vmul.f32 %v862, %v913
        %v991 = vmul.f32 %v863, %v918
        %v992 = vmul.f32 %v864, %v923
        %v993 = vmul.f32 %v865, %v928
        %v994 = vmul.f32 %v866, %v933
        %v995 = vmul.f32 %v867, %v938
        %v996 = vmul.f32 %v868, %v943
        %v997 = vmul.f32 %v869, %v948
        %v998 = vmul.f32 %v870, %v953
        %v999 = vmul.f32 %v871, %v958
        %v1000 = vmul.f32 %v872, %v963
        %v1001 = vmul.f32 %v873, %v968
        %v1002 = vmul.f32 %v874, %v973
        %v1003 = vmul.f32 %v875, %v978
        %v1004 = vmul.f32 %v876, %v983
        %v1005 = vmul.f32 %v877, %v988
        %1006 = vst [vmem:[%s346] sm:$0xff] %v990
        %1007 = vst [vmem:[%s346 + $0x8] sm:$0xff] %v991
        %1008 = vst [vmem:[%s346 + $0x10] sm:$0xff] %v992
        %1009 = vst [vmem:[%s346 + $0x18] sm:$0xff] %v993
        %1010 = vst [vmem:[%s346 + $0x20] sm:$0xff] %v994
        %1011 = vst [vmem:[%s346 + $0x28] sm:$0xff] %v995
        %1012 = vst [vmem:[%s346 + $0x30] sm:$0xff] %v996
        %1013 = vst [vmem:[%s346 + $0x38] sm:$0xff] %v997
        %1014 = vst [vmem:[%s346 + $0x40] sm:$0xff] %v998
        %1015 = vst [vmem:[%s346 + $0x48] sm:$0xff] %v999
        %1016 = vst [vmem:[%s346 + $0x50] sm:$0xff] %v1000
        %1017 = vst [vmem:[%s346 + $0x58] sm:$0xff] %v1001
        %1018 = vst [vmem:[%s346 + $0x60] sm:$0xff] %v1002
        %1019 = vst [vmem:[%s346 + $0x68] sm:$0xff] %v1003
        %1020 = vst [vmem:[%s346 + $0x70] sm:$0xff] %v1004
        %1021 = vst [vmem:[%s346 + $0x78] sm:$0xff] %v1005
      $region44: #{bidirectional_attention.1} parent=35 // pred_fallthru
        _
      %s1022 = smul.u32 2, %s22
      %p1023 = scmp.lt.s32.totalorder %s21, 1
      %s1024 = scalar_select %p1023, %s21, 1
      %p1025 = scmp.lt.s32.totalorder %s1022, 5
      %s1026 = scalar_select %p1025, %s1022, 5
      %s1027 = smul.addr %s1024, 6
      %s1028 = sadd.s32 %s1026, %s1027
      %s1029 = smul.addr %s1028, 8
      %s1030 = scalar_lea.vmem %s4, %s1029
      %p1031 = scmp.lt.s32.totalorder %s21, 1
      %s1032 = scalar_select %p1031, %s21, 1
      %s1033 = smul.addr %s1032, 16
      %s1034 = smul.addr %s1033, 8
      %s1035 = scalar_lea.vmem %s5, %s1034
      // Predicated region
      $region45: #{bidirectional_attention.1} parent=35 // pred_check
        %p1036 = pneg %p157
      $region46: #{bidirectional_attention.1} parent=35 // pred_check_branch
        %1038 = sbr.rel (%p1036) target = $region48
      $region47: #{bidirectional_attention.1} parent=35 // pred_region
        %s1039 = smul.u32 2, %s22
      $region48: #{bidirectional_attention.1} parent=35 // pred_fallthru
        _
      // Predicated region
      $region49: #{bidirectional_attention.1} parent=35 // pred_check
        %p1040 = pneg %p183
      $region50: #{bidirectional_attention.1} parent=35 // pred_check_branch
        %1042 = sbr.rel (%p1040) target = $region52
      $region51: #{bidirectional_attention.1} parent=35 // pred_region
        _
      $region52: #{bidirectional_attention.1} parent=35 // pred_fallthru
        _
    $region36: #{bidirectional_attention.1} parent=5 // pred_fallthru
      _
    %p1043 = scmp.le.s32.totalorder 2, %s12
    // Predicated region
    $region53: #{bidirectional_attention.1} parent=5 // pred_check
      %p1044 = pneg %p1043
    $region54: #{bidirectional_attention.1} parent=5 // pred_check_branch
      %1046 = sbr.rel (%p1044) target = $region56
    $region55: #{bidirectional_attention.1} parent=5 // pred_region
      %s1047 = ssub.s32 %s12, 2
      // Predicated region
      $region57: #{bidirectional_attention.1} parent=55 // pred_check
        %p1048 = pneg %p163
      $region58: #{bidirectional_attention.1} parent=55 // pred_check_branch
        %1050 = sbr.rel (%p1048) target = $region60
      $region59: #{bidirectional_attention.1} parent=55 // pred_region
        %s1051 = smul.u32 2, %s24
        %p1052 = scmp.lt.s32.totalorder %s23, 1
        %s1053 = scalar_select %p1052, %s23, 1
        %p1054 = scmp.lt.s32.totalorder %s1051, 5
        %s1055 = scalar_select %p1054, %s1051, 5
        %s1056 = smul.addr %s1053, 6
        %s1057 = sadd.s32 %s1055, %s1056
        %s1058 = smul.addr %s1057, 8
        %s1059 = scalar_lea.vmem %s4, %s1058
      $region60: #{bidirectional_attention.1} parent=55 // pred_fallthru
        _
      // Predicated region
      $region61: #{bidirectional_attention.1} parent=55 // pred_check
        %p1060 = pneg %p189
      $region62: #{bidirectional_attention.1} parent=55 // pred_check_branch
        %1062 = sbr.rel (%p1060) target = $region64
      $region63: #{bidirectional_attention.1} parent=55 // pred_region
        %p1063 = scmp.lt.s32.totalorder %s23, 1
        %s1064 = scalar_select %p1063, %s23, 1
        %s1065 = smul.addr %s1064, 16
        %s1066 = smul.addr %s1065, 8
        %s1067 = scalar_lea.vmem %s5, %s1066
      $region64: #{bidirectional_attention.1} parent=55 // pred_fallthru
        _
    $region56: #{bidirectional_attention.1} parent=5 // pred_fallthru
      _
  $region6: #{bidirectional_attention.1} parent=0 // loop_footer
    %s16 = sadd.s32 1, %s12
  $region7: #{bidirectional_attention.1} parent=0 // loop_footer_branch
    %11 = sbr.rel target = $region3
  $region8: #{bidirectional_attention.1} parent=0 // loop_exit
    _

</llo_original>
